<compile_context>
chip_gen: v7x
topology: tpu7x:2x2x1
jax: 0.10.0
libtpu: 0.0.40
codegen_flags: <defaults>
</compile_context>

<pallas_src>
import jax
import jax.numpy as jnp
from jax.experimental import pallas as pl
from jax.experimental.pallas import tpu as pltpu


def _round_up(x, m):
    return (x + m - 1) // m * m


def _similarity_kernel_cached(t1_ref, t2_ref, g_ref, out_ref, p1_ref):
    """Grid (b, i, j); j is "arbitrary".  p1 is cached across the j axis."""
    # t1_ref : (NB, TM, Hp) bf16
    # t2_ref : (NB, TN, Hp) bf16
    # g_ref  : (Hp, Hp)     f32 (or bf16); grid-invariant, single-buffered
    # out_ref: (NB, TM, TN)
    # p1_ref : (NB, TM, Hp) bf16 VMEM scratch, valid for the current (b, i)
    nb, tm, hp = t1_ref.shape

    @pl.when(pl.program_id(2) == 0)
    def _():
        # Depends only on (b, i): compute once, reuse for every j tile.
        x = t1_ref[...].reshape(nb * tm, hp).astype(g_ref.dtype)
        p1 = jnp.dot(x, g_ref[...], preferred_element_type=jnp.float32)
        p1_ref[...] = p1.reshape(nb, tm, hp).astype(p1_ref.dtype)

    # Contract the last dims of p1 and t2 (trans_b) - no explicit transpose.
    s = jnp.einsum("nmk,npk->nmp", p1_ref[...], t2_ref[...],
                   preferred_element_type=jnp.float32)
    out_ref[...] = s.astype(out_ref.dtype)


def _similarity_kernel_nocache(t1_ref, t2_ref, g_ref, out_ref):
    """Fully parallel variant (used when caching would serialize the grid)."""
    nb, tm, hp = t1_ref.shape
    x = t1_ref[...].reshape(nb * tm, hp).astype(g_ref.dtype)
    p1 = jnp.dot(x, g_ref[...], preferred_element_type=jnp.float32)
    p1 = p1.reshape(nb, tm, hp).astype(jnp.bfloat16)
    s = jnp.einsum("nmk,npk->nmp", p1, t2_ref[...],
                   preferred_element_type=jnp.float32)
    out_ref[...] = s.astype(out_ref.dtype)


def mlp_similarity(t1, t2, w, *, out_dtype=jnp.float32, g_dtype=jnp.float32):
    """S[b] = (t1[b] @ W) @ (t2[b] @ W)^T for each batch element b."""
    B, L1, H = t1.shape
    Bb, L2, Hb = t2.shape
    assert (Bb, Hb) == (B, H) and w.shape == (H, H)

    # One-time precompute: G = W @ W^T (drops the per-batch t2 @ W matmul).
    # g_dtype=jnp.bfloat16 trades first-dot precision for MXU throughput; the
    # cost of the f32 default is amortized by the p1 cache (once per (b, i)).
    g = jnp.dot(w, w.T, preferred_element_type=jnp.float32).astype(g_dtype)

    # ---- hardware-derived budgets -------------------------------------------
    try:
        vmem_cap = int(pltpu.get_tpu_info().vmem_capacity_bytes)
    except Exception:
        vmem_cap = 64 * 1024 * 1024          # conservative (v7x-sized) fallback
    big_vmem = vmem_cap >= 96 * 1024 * 1024  # v5e/v6e: 128 MiB, v7x: 64 MiB
    tm_cap = 512 if big_vmem else 256        # bigger i tiles cut t2 re-fetch traffic
    tn_cap = 256                             # MXU-native output width

    # ---- padded / tiled layout ----------------------------------------------
    hp = _round_up(H, 128)                   # lane axis of the projections
    if L1 <= tm_cap:
        l1p = _round_up(L1, 16)              # bf16 sublane packing
        tm = l1p
    else:
        l1p = _round_up(L1, tm_cap)
        tm = tm_cap
    if L2 <= tn_cap:
        l2p = _round_up(L2, 128)             # lane-dense output stores
        tn = l2p
    else:
        l2p = _round_up(L2, tn_cap)
        tn = tn_cap

    # Small-L workloads: block several batches per grid step so MXU rows and the
    # ~0.35 us / grid-step overhead are amortized.
    if B > 1 and l1p <= 128 and l2p <= 256:
        nb = min(B, max(1, 256 // tm))
    else:
        nb = 1
    bp = _round_up(B, nb)

    # bf16 MXU feed, f32 accumulation in-kernel.  Zero padding in B/L/H is exact
    # (padded rows/cols contribute nothing).  Conversion / padding are skipped
    # when the inputs are already bf16 / aligned.
    def _prep(x, lp):
        if x.dtype != jnp.bfloat16:
            x = x.astype(jnp.bfloat16)
        pad = ((0, bp - x.shape[0]), (0, lp - x.shape[1]), (0, hp - x.shape[2]))
        if any(p[1] for p in pad):
            x = jnp.pad(x, pad)
        return x

    t1p = _prep(t1, l1p)
    t2p = _prep(t2, l2p)
    if hp != H:
        g = jnp.pad(g, ((0, hp - H), (0, hp - H)))

    n_b, n_i, n_j = bp // nb, l1p // tm, l2p // tn

    # p1 = t1_tile @ G depends only on (b, i): cache it in VMEM and mark j
    # "arbitrary".  If that would leave fewer than 2 units of parallel work while
    # several j tiles exist (idling v7x's second core), fall back to the
    # cache-free fully parallel kernel instead.
    use_cache = not (n_j > 1 and n_b * n_i < 2)
    if use_cache:
        kernel = _similarity_kernel_cached
        scratch = [pltpu.VMEM((nb, tm, hp), jnp.bfloat16)]
        semantics = ("parallel", "parallel", "arbitrary")
    else:
        kernel = _similarity_kernel_nocache
        scratch = []
        semantics = ("parallel", "parallel", "parallel")

    # The grid-invariant G block never changes -> single-buffer it (halves its
    # VMEM footprint vs. default double buffering; matters on v7x at large H).
    try:
        g_spec = pl.BlockSpec((hp, hp), lambda b, i, j: (0, 0),
                              pipeline_mode=pl.Buffered(1))
    except TypeError:  # BlockSpec without pipeline_mode support
        g_spec = pl.BlockSpec((hp, hp), lambda b, i, j: (0, 0))

    # TODO(synk): for very large H (resident (Hp,Hp) G no longer fits VMEM -
    # roughly Hp >= 2048 on v7x, Hp >= 3584 on v6e/v5e) add a trailing
    # "arbitrary" H-chunk grid axis with an f32 VMEM accumulator.
    # TODO(synk): on v5e (DMA-bound once the p1 cache is in place) consider
    # pipeline_mode=pl.Buffered(3) on the t2 spec to hide the exposed DMA.

    out_isz = jnp.dtype(out_dtype).itemsize
    est = (2 * nb * tm * hp * 2             # t1 blocks, double-buffered bf16
           + 2 * nb * tn * hp * 2           # t2 blocks, double-buffered bf16
           + 2 * nb * tm * tn * out_isz     # out blocks, double-buffered
           + hp * hp * g.dtype.itemsize     # G, single-buffered
           + nb * tm * hp * 2               # p1 VMEM cache
           + nb * tm * hp * 4 + nb * tm * tn * 4)  # f32 intermediates
    vmem_limit = int(min(max(2 * est, 16 * 1024 * 1024),
                         vmem_cap - 16 * 1024 * 1024))

    out = pl.pallas_call(
        kernel,
        out_shape=jax.ShapeDtypeStruct((bp, l1p, l2p), out_dtype),
        grid_spec=pltpu.PrefetchScalarGridSpec(
            num_scalar_prefetch=0,
            grid=(n_b, n_i, n_j),
            in_specs=[
                pl.BlockSpec((nb, tm, hp), lambda b, i, j: (b, i, 0)),
                pl.BlockSpec((nb, tn, hp), lambda b, i, j: (b, j, 0)),
                g_spec,
            ],
            out_specs=pl.BlockSpec((nb, tm, tn), lambda b, i, j: (b, i, j)),
            scratch_shapes=scratch,
        ),
        compiler_params=pltpu.CompilerParams(
            dimension_semantics=semantics,
            vmem_limit_bytes=vmem_limit,
        ),
    )(t1p, t2p, g)

    if (bp, l1p, l2p) != (B, L1, L2):
        out = out[:B, :L1, :L2]
    return out


def _reference(t1, t2, w):
    p1 = jnp.einsum("blh,hk->blk", t1, w)
    p2 = jnp.einsum("blh,hk->blk", t2, w)
    return jnp.einsum("bik,bjk->bij", p1, p2)


if __name__ == "__main__":
    key = jax.random.PRNGKey(0)

    def _check(B, L1, L2, H, keys):
        k1, k2, kw = keys
        t1 = jax.random.normal(k1, (B, L1, H), dtype=jnp.float32)
        t2 = jax.random.normal(k2, (B, L2, H), dtype=jnp.float32)
        # Deterministic parameter init (uniform(-1/sqrt(H), 1/sqrt(H)), Linear-style).
        bound = 1.0 / (H ** 0.5)
        w = jax.random.uniform(kw, (H, H), dtype=jnp.float32,
                               minval=-bound, maxval=bound)
        out = jax.block_until_ready(mlp_similarity(t1, t2, w))
        ref = _reference(t1, t2, w)
        assert out.shape == (B, L1, L2)
        # Loose-ish tolerance: the kernel feeds the MXU bf16 operands (f32 acc).
        assert jnp.allclose(out, ref, atol=1e-1, rtol=5e-2), (
            float(jnp.max(jnp.abs(out - ref))))

    ks = jax.random.split(key, 6)
    # Small shape implied by the module (batch=2, seq=8, hidden=32).
    _check(2, 8, 8, 32, ks[0:3])
    # Unaligned multi-j-tile shape: exercises padding and the cached-p1 path.
    _check(2, 40, 300, 200, ks[3:6])

    print("KERNEL_OK")
</pallas_src>

<mosaic_0001>
module attributes {stable_mosaic.version = 11 : i64} {
  func.func @_similarity_kernel_cached(%arg0: i32, %arg1: i32, %arg2: i32, %arg3: memref<2x16x128xbf16, #tpu.memory_space<vmem>>, %arg4: memref<2x128x128xbf16, #tpu.memory_space<vmem>>, %arg5: memref<128x128xf32, #tpu.memory_space<vmem>>, %arg6: memref<2x16x128xf32, #tpu.memory_space<vmem>>, %arg7: memref<2x16x128xbf16, #tpu.memory_space<vmem>>) attributes {dimension_semantics = [#tpu.dimension_semantics<parallel>, #tpu.dimension_semantics<parallel>, #tpu.dimension_semantics<arbitrary>], iteration_bounds = array<i64: 1, 1, 1>, scalar_prefetch = 0 : i64, scratch_operands = 1 : i64, tpu.core_type = #tpu.core_type<tc>, window_params = [{transform_indices = @transform_0, window_bounds = array<i64: 2, 16, 128>}, {transform_indices = @transform_1, window_bounds = array<i64: 2, 128, 128>}, {pipeline_mode = #tpu.pipeline_mode<synchronous>, transform_indices = @transform_2, window_bounds = array<i64: 128, 128>}, {transform_indices = @transform_3, window_bounds = array<i64: 2, 16, 128>}]} {
    %c0_i32 = arith.constant 0 : i32
    %0 = arith.cmpi eq, %arg2, %c0_i32 : i32
    %1 = arith.extui %0 : i1 to i32
    %c0_i32_0 = arith.constant 0 : i32
    %2 = arith.cmpi ne, %1, %c0_i32_0 : i32
    scf.if %2 {
      %c0_9 = arith.constant 0 : index
      %c0_10 = arith.constant 0 : index
      %c0_11 = arith.constant 0 : index
      %7 = vector.load %arg3[%c0_9, %c0_10, %c0_11] : memref<2x16x128xbf16, #tpu.memory_space<vmem>>, vector<2x16x128xbf16>
      %8 = vector.shape_cast %7 : vector<2x16x128xbf16> to vector<32x128xbf16>
      %9 = arith.extf %8 : vector<32x128xbf16> to vector<32x128xf32>
      %c0_12 = arith.constant 0 : index
      %c0_13 = arith.constant 0 : index
      %10 = vector.load %arg5[%c0_12, %c0_13] : memref<128x128xf32, #tpu.memory_space<vmem>>, vector<128x128xf32>
      %cst_14 = arith.constant dense<0.000000e+00> : vector<32x128xf32>
      %11 = tpu.matmul %9, %10, %cst_14 {dimension_numbers = #tpu.dot_dimension_numbers<[1], [0], [0], [1], [0, 0, 1, 1], [], []>} : vector<32x128xf32>, vector<128x128xf32>, vector<32x128xf32> -> vector<32x128xf32>
      %12 = vector.shape_cast %11 : vector<32x128xf32> to vector<2x16x128xf32>
      %13 = arith.truncf %12 : vector<2x16x128xf32> to vector<2x16x128xbf16>
      %c0_15 = arith.constant 0 : index
      %c0_16 = arith.constant 0 : index
      %c0_17 = arith.constant 0 : index
      %14 = vector.load %arg7[%c0_15, %c0_16, %c0_17] : memref<2x16x128xbf16, #tpu.memory_space<vmem>>, vector<2x16x128xbf16>
      tpu.vector_store %arg7[%c0_15, %c0_16, %c0_17], %13 {strides = array<i32>} : memref<2x16x128xbf16, #tpu.memory_space<vmem>>, vector<2x16x128xbf16>,
    } else {
    }
    %c0 = arith.constant 0 : index
    %c0_1 = arith.constant 0 : index
    %c0_2 = arith.constant 0 : index
    %3 = vector.load %arg7[%c0, %c0_1, %c0_2] : memref<2x16x128xbf16, #tpu.memory_space<vmem>>, vector<2x16x128xbf16>
    %c0_3 = arith.constant 0 : index
    %c0_4 = arith.constant 0 : index
    %c0_5 = arith.constant 0 : index
    %4 = vector.load %arg4[%c0_3, %c0_4, %c0_5] : memref<2x128x128xbf16, #tpu.memory_space<vmem>>, vector<2x128x128xbf16>
    "tpu.trace_start"() <{level = 10 : i32, message = "nmk,npk->nmp"}> : () -> ()
    %cst = arith.constant dense<0.000000e+00> : vector<2x16x128xf32>
    %5 = tpu.matmul %3, %4, %cst {dimension_numbers = #tpu.dot_dimension_numbers<[2], [2], [1], [1], [0, 0, 0, 1, 1, 1], [0], [0]>} : vector<2x16x128xbf16>, vector<2x128x128xbf16>, vector<2x16x128xf32> -> vector<2x16x128xf32>
    "tpu.trace_stop"() : () -> ()
    %c0_6 = arith.constant 0 : index
    %c0_7 = arith.constant 0 : index
    %c0_8 = arith.constant 0 : index
    %6 = vector.load %arg6[%c0_6, %c0_7, %c0_8] : memref<2x16x128xf32, #tpu.memory_space<vmem>>, vector<2x16x128xf32>
    tpu.vector_store %arg6[%c0_6, %c0_7, %c0_8], %5 {strides = array<i32>} : memref<2x16x128xf32, #tpu.memory_space<vmem>>, vector<2x16x128xf32>,
    return
  }
  func.func @transform_0(%arg0: i32, %arg1: i32, %arg2: i32) -> (i32, i32, i32) {
    %c0_i32 = arith.constant 0 : i32
    %c0_i32_0 = arith.constant 0 : i32
    return %arg0, %arg1, %c0_i32 : i32, i32, i32
  }
  func.func @transform_1(%arg0: i32, %arg1: i32, %arg2: i32) -> (i32, i32, i32) {
    %c0_i32 = arith.constant 0 : i32
    %c0_i32_0 = arith.constant 0 : i32
    return %arg0, %arg2, %c0_i32 : i32, i32, i32
  }
  func.func @transform_2(%arg0: i32, %arg1: i32, %arg2: i32) -> (i32, i32) {
    %c0_i32 = arith.constant 0 : i32
    %c0_i32_0 = arith.constant 0 : i32
    %c0_i32_1 = arith.constant 0 : i32
    return %c0_i32, %c0_i32_0 : i32, i32
  }
  func.func @transform_3(%arg0: i32, %arg1: i32, %arg2: i32) -> (i32, i32, i32) {
    %c0_i32 = arith.constant 0 : i32
    return %arg0, %arg1, %arg2 : i32, i32, i32
  }
}

</mosaic_0001>

<llo_original>
// kernel: tpu_custom_call.1
$region0: #{tpu_custom_call.1}
  #allocation0 [shape = 'u32[]', space=smem, size = 0x4, offset = 0x4, fixed_abs, tag = 'smem constant byte address 0x4 - core index']
  #allocation1 [shape = 'u32[144,128]{1,0:T(1,128)}', space=vmem, size = 0x12000, scoped, tag = 'internal scratch']
  #allocation2 [shape = 'bf16[2,16,128]{2,1,0:T(16,128)(2,1)}', space=vmem, size = 0x2000, scoped, tag = 'scratch operand']
  %s0 = inlined_call_operand.hbm [shape: bf16[2,16,128], index: 0, kind: input, shape index: {}]
  %s1 = inlined_call_operand.hbm [shape: bf16[2,128,128], index: 1, kind: input, shape index: {}]
  %s2 = inlined_call_operand.hbm [shape: f32[128,128], index: 2, kind: input, shape index: {}]
  %s3 = inlined_call_operand.hbm [shape: f32[2,16,128], index: 3, kind: output, shape index: {}]
  %s4 = sld [smem:[#allocation0]]
  $region38: #{tpu_custom_call.1} parent=0
    _
  %s6 = ssub.s32 1, %s4
  %s7 = scalar_select 0, %s6, %s4
  $region1: #{tpu_custom_call.1} parent=0
    #allocation3 [shape = 'u8[8192]{0}', space=vmem, size = 0x2000, scoped, tag = 'input window, operand 0, single buffered']
    #allocation4 [shape = 's32[1]{0}', space=sflag, size = 0x4, scoped, tag = 'scoped memory for tpu_custom_call.1']
    #allocation5 [shape = 's32[1]{0}', space=sflag, size = 0x4, scoped, tag = 'scoped memory for tpu_custom_call.1']
    #allocation6 [shape = 'u8[65536]{0}', space=vmem, size = 0x10000, scoped, tag = 'input window, operand 1, single buffered']
    #allocation7 [shape = 's32[1]{0}', space=sflag, size = 0x4, scoped, tag = 'scoped memory for tpu_custom_call.1']
    #allocation8 [shape = 'u8[65536]{0}', space=vmem, size = 0x10000, scoped, tag = 'input window, operand 2, single buffered']
    #allocation9 [shape = 'u8[16384]{0}', space=vmem, size = 0x4000, scoped, tag = 'output window, operand 0, single buffered']
    %8 = vsyncpa [#allocation4], 0
    %9 = vsyncpa [#allocation7], 0
    %10 = vsyncpa [#allocation5], 0
    // Predicated region
    $region2: #{tpu_custom_call.1} parent=1 // pred_check
      _
    $region3: #{tpu_custom_call.1} parent=1 // pred_check_branch
      %12 = sbr.rel (0) target = $region5
    $region4: #{tpu_custom_call.1} parent=1 // pred_region
      %s14 = ssub.s32 256, 256
      %15 = vsyncadd [#allocation4], %s14
      %s16 = sshll.u32 [#allocation3], 4
      %s17 = int_to_ptr.vmem [resolvable:$true] %s16
      %22 = dma.hbm_to_vmem [thread:$0]  %s0, 256, %s17, [#allocation4], 64, 64, 4
    $region5: #{tpu_custom_call.1} parent=1 // pred_fallthru
      _
    // Predicated region
    $region6: #{tpu_custom_call.1} parent=1 // pred_check
      _
    $region7: #{tpu_custom_call.1} parent=1 // pred_check_branch
      %24 = sbr.rel (0) target = $region9
    $region8: #{tpu_custom_call.1} parent=1 // pred_region
      %s26 = ssub.s32 2048, 2048
      %27 = vsyncadd [#allocation7], %s26
      %s28 = sshll.u32 [#allocation6], 4
      %s29 = int_to_ptr.vmem [resolvable:$true] %s28
      %34 = dma.hbm_to_vmem [thread:$0]  %s1, 2048, %s29, [#allocation7], 64, 64, 4
    $region9: #{tpu_custom_call.1} parent=1 // pred_fallthru
      _
    // Predicated region
    $region10: #{tpu_custom_call.1} parent=1 // pred_check
      _
    $region11: #{tpu_custom_call.1} parent=1 // pred_check_branch
      %36 = sbr.rel (0) target = $region13
    $region12: #{tpu_custom_call.1} parent=1 // pred_region
      %s38 = ssub.s32 2048, 2048
      %39 = vsyncadd [#allocation7], %s38
      %s40 = sshll.u32 [#allocation8], 4
      %s41 = int_to_ptr.vmem [resolvable:$true] %s40
      %46 = dma.hbm_to_vmem [thread:$0]  %s2, 2048, %s41, [#allocation7], 128, 128, 8
    $region13: #{tpu_custom_call.1} parent=1 // pred_fallthru
      _
    // Predicated region
    $region14: #{tpu_custom_call.1} parent=1 // pred_check
      _
    $region15: #{tpu_custom_call.1} parent=1 // pred_check_branch
      %48 = sbr.rel (0) target = $region17
    $region16: #{tpu_custom_call.1} parent=1 // pred_region
      %49 = dma.done [#allocation4], 256
    $region17: #{tpu_custom_call.1} parent=1 // pred_fallthru
      _
    // Predicated region
    $region18: #{tpu_custom_call.1} parent=1 // pred_check
      _
    $region19: #{tpu_custom_call.1} parent=1 // pred_check_branch
      %51 = sbr.rel (0) target = $region21
    $region20: #{tpu_custom_call.1} parent=1 // pred_region
      %52 = dma.done [#allocation7], 2048
    $region21: #{tpu_custom_call.1} parent=1 // pred_fallthru
      _
    // Predicated region
    $region22: #{tpu_custom_call.1} parent=1 // pred_check
      _
    $region23: #{tpu_custom_call.1} parent=1 // pred_check_branch
      %54 = sbr.rel (0) target = $region25
    $region24: #{tpu_custom_call.1} parent=1 // pred_region
      %55 = dma.done [#allocation7], 2048
    $region25: #{tpu_custom_call.1} parent=1 // pred_fallthru
      _
    %p57 = scmp.eq.s32.totalorder 0, 0
    // Predicated region
    $region26: #{tpu_custom_call.1} parent=1 // pred_check
      %p58 = pneg %p57
    $region27: #{tpu_custom_call.1} parent=1 // pred_check_branch
      %60 = sbr.rel (%p58) target = $region29
    $region28: #{tpu_custom_call.1} parent=1 // pred_region
      %v61 = vld [vmem:[#allocation3] sm:$0xf]
      %v62 = vld [vmem:[#allocation3 + $0x4] sm:$0xf]
      %v63 = vld [vmem:[#allocation3 + $0x8] sm:$0xf]
      %v64 = vld [vmem:[#allocation3 + $0xc] sm:$0xf]
      %v65 = vunpack.c.l.bf16 %v61
      %v66 = vunpack.c.l.bf16 %v62
      %v67 = vunpack.c.l.bf16 %v63
      %v68 = vunpack.c.l.bf16 %v64
      %v69 = vld [vmem:[#allocation8] sm:$0xff]
      %v70 = vld [vmem:[#allocation8 + $0x8] sm:$0xff]
      %v71 = vld [vmem:[#allocation8 + $0x10] sm:$0xff]
      %v72 = vld [vmem:[#allocation8 + $0x18] sm:$0xff]
      %v73 = vld [vmem:[#allocation8 + $0x20] sm:$0xff]
      %v74 = vld [vmem:[#allocation8 + $0x28] sm:$0xff]
      %v75 = vld [vmem:[#allocation8 + $0x30] sm:$0xff]
      %v76 = vld [vmem:[#allocation8 + $0x38] sm:$0xff]
      %v77 = vld [vmem:[#allocation8 + $0x40] sm:$0xff]
      %v78 = vld [vmem:[#allocation8 + $0x48] sm:$0xff]
      %v79 = vld [vmem:[#allocation8 + $0x50] sm:$0xff]
      %v80 = vld [vmem:[#allocation8 + $0x58] sm:$0xff]
      %v81 = vld [vmem:[#allocation8 + $0x60] sm:$0xff]
      %v82 = vld [vmem:[#allocation8 + $0x68] sm:$0xff]
      %v83 = vld [vmem:[#allocation8 + $0x70] sm:$0xff]
      %v84 = vld [vmem:[#allocation8 + $0x78] sm:$0xff]
      %85 = vmatprep.subr.mxu0 0.0
      %86 = vmatpush1.msra.mxu0 %v69
      %87 = vmatprep.subr.mxu0 0.0
      %88 = vmatpush1.msra.mxu0 %v70
      %89 = vmatprep.subr.mxu0 0.0
      %90 = vmatpush1.msra.mxu0 %v71
      %91 = vmatprep.subr.mxu0 0.0
      %92 = vmatpush1.msra.mxu0 %v72
      %93 = vmatprep.subr.mxu0 0.0
      %94 = vmatpush1.msra.mxu0 %v73
      %95 = vmatprep.subr.mxu0 0.0
      %96 = vmatpush1.msra.mxu0 %v74
      %97 = vmatprep.subr.mxu0 0.0
      %98 = vmatpush1.msra.mxu0 %v75
      %99 = vmatprep.subr.mxu0 0.0
      %100 = vmatpush1.msra.mxu0 %v76
      %101 = vmatprep.subr.mxu0 0.0
      %102 = vmatpush1.msra.mxu0 %v77
      %103 = vmatprep.subr.mxu0 0.0
      %104 = vmatpush1.msra.mxu0 %v78
      %105 = vmatprep.subr.mxu0 0.0
      %106 = vmatpush1.msra.mxu0 %v79
      %107 = vmatprep.subr.mxu0 0.0
      %108 = vmatpush1.msra.mxu0 %v80
      %109 = vmatprep.subr.mxu0 0.0
      %110 = vmatpush1.msra.mxu0 %v81
      %111 = vmatprep.subr.mxu0 0.0
      %112 = vmatpush1.msra.mxu0 %v82
      %113 = vmatprep.subr.mxu0 0.0
      %114 = vmatpush1.msra.mxu0 %v83
      %115 = vmatprep.subr.mxu0 0.0
      %116 = vmatpush1.msra.mxu0 %v84
      %117 = vmatprep.subr.mxu0 0.0
      %118 = vmatpush1.msra.mxu0 0.0
      %119 = vmatprep.subr.mxu0 0.0
      %120 = vmatpush1.msra.mxu0 0.0
      %121 = vmatprep.subr.mxu0 0.0
      %122 = vmatpush1.msra.mxu0 0.0
      %123 = vmatprep.subr.mxu0 0.0
      %124 = vmatpush1.msra.mxu0 0.0
      %125 = vmatprep.subr.mxu0 0.0
      %126 = vmatpush1.msra.mxu0 0.0
      %127 = vmatprep.subr.mxu0 0.0
      %128 = vmatpush1.msra.mxu0 0.0
      %129 = vmatprep.subr.mxu0 0.0
      %130 = vmatpush1.msra.mxu0 0.0
      %131 = vmatprep.subr.mxu0 0.0
      %132 = vmatpush1.msra.mxu0 0.0
      %133 = vmatprep.subr.mxu0 0.0
      %134 = vmatpush1.msra.mxu0 0.0
      %135 = vmatprep.subr.mxu0 0.0
      %136 = vmatpush1.msra.mxu0 0.0
      %137 = vmatprep.subr.mxu0 0.0
      %138 = vmatpush1.msra.mxu0 0.0
      %139 = vmatprep.subr.mxu0 0.0
      %140 = vmatpush1.msra.mxu0 0.0
      %141 = vmatprep.subr.mxu0 0.0
      %142 = vmatpush1.msra.mxu0 0.0
      %143 = vmatprep.subr.mxu0 0.0
      %144 = vmatpush1.msra.mxu0 0.0
      %145 = vmatprep.subr.mxu0 0.0
      %146 = vmatpush1.msra.mxu0 0.0
      %147 = vmatprep.subr.mxu0 0.0
      %148 = vmatpush1.msra.mxu0 0.0
      %149 = vmatprep.mubr.f32.mxu0 0.0
      %150 = vmatmul.mubr.f32.gmra.mrb[0].mxu0 %v65
      %v151 = vpop.f32.mrb[0].mxu0
      %v152 = vadd.f32 0.0, %v151
      %v153 = vpop.f32.mrb[0].mxu0
      %154 = vmatprep.mubr.f32.mxu0 0.0
      %155 = vmatmul.mubr.f32.gmra.mrb[0].mxu0 %v66
      %v156 = vpop.f32.mrb[0].mxu0
      %v157 = vadd.f32 0.0, %v156
      %v158 = vpop.f32.mrb[0].mxu0
      %159 = vmatprep.mubr.f32.mxu0 0.0
      %160 = vmatmul.mubr.f32.gmra.mrb[0].mxu0 %v67
      %v161 = vpop.f32.mrb[0].mxu0
      %v162 = vadd.f32 0.0, %v161
      %v163 = vpop.f32.mrb[0].mxu0
      %164 = vmatprep.mubr.f32.mxu0 0.0
      %165 = vmatmul.mubr.f32.gmra.mrb[0].mxu0 %v68
      %v166 = vpop.f32.mrb[0].mxu0
      %v167 = vadd.f32 0.0, %v166
      %v168 = vpop.f32.mrb[0].mxu0
      %169 = vdwg.mxu0
      %v170 = vpack.c.bf16 %v157, %v152
      %v171 = vpack.c.bf16 %v167, %v162
      %172 = vst [vmem:[#allocation2] sm:$0xff] %v170
      %173 = vst [vmem:[#allocation2 + $0x8] sm:$0xff] %v171
    $region29: #{tpu_custom_call.1} parent=1 // pred_fallthru
      _
    %v174 = vld [vmem:[#allocation2] sm:$0xff]
    %v175 = vld [vmem:[#allocation2 + $0x8] sm:$0xff]
    %v176 = vld [vmem:[#allocation6] sm:$0xf]
    %v177 = vld [vmem:[#allocation6 + $0x4] sm:$0xf]
    %v178 = vld [vmem:[#allocation6 + $0x8] sm:$0xf]
    %v179 = vld [vmem:[#allocation6 + $0xc] sm:$0xf]
    %v180 = vld [vmem:[#allocation6 + $0x10] sm:$0xf]
    %v181 = vld [vmem:[#allocation6 + $0x14] sm:$0xf]
    %v182 = vld [vmem:[#allocation6 + $0x18] sm:$0xf]
    %v183 = vld [vmem:[#allocation6 + $0x1c] sm:$0xf]
    %v184 = vld [vmem:[#allocation6 + $0x20] sm:$0xf]
    %v185 = vld [vmem:[#allocation6 + $0x24] sm:$0xf]
    %v186 = vld [vmem:[#allocation6 + $0x28] sm:$0xf]
    %v187 = vld [vmem:[#allocation6 + $0x2c] sm:$0xf]
    %v188 = vld [vmem:[#allocation6 + $0x30] sm:$0xf]
    %v189 = vld [vmem:[#allocation6 + $0x34] sm:$0xf]
    %v190 = vld [vmem:[#allocation6 + $0x38] sm:$0xf]
    %v191 = vld [vmem:[#allocation6 + $0x3c] sm:$0xf]
    %v192 = vld [vmem:[#allocation6 + $0x40] sm:$0xf]
    %v193 = vld [vmem:[#allocation6 + $0x44] sm:$0xf]
    %v194 = vld [vmem:[#allocation6 + $0x48] sm:$0xf]
    %v195 = vld [vmem:[#allocation6 + $0x4c] sm:$0xf]
    %v196 = vld [vmem:[#allocation6 + $0x50] sm:$0xf]
    %v197 = vld [vmem:[#allocation6 + $0x54] sm:$0xf]
    %v198 = vld [vmem:[#allocation6 + $0x58] sm:$0xf]
    %v199 = vld [vmem:[#allocation6 + $0x5c] sm:$0xf]
    %v200 = vld [vmem:[#allocation6 + $0x60] sm:$0xf]
    %v201 = vld [vmem:[#allocation6 + $0x64] sm:$0xf]
    %v202 = vld [vmem:[#allocation6 + $0x68] sm:$0xf]
    %v203 = vld [vmem:[#allocation6 + $0x6c] sm:$0xf]
    %v204 = vld [vmem:[#allocation6 + $0x70] sm:$0xf]
    %v205 = vld [vmem:[#allocation6 + $0x74] sm:$0xf]
    %v206 = vld [vmem:[#allocation6 + $0x78] sm:$0xf]
    %v207 = vld [vmem:[#allocation6 + $0x7c] sm:$0xf]
    %v224 = vunpack.c.l.b16 %v176
    %v225 = vunpack.c.l.b16 %v177
    %v226 = vunpack.c.l.b16 %v178
    %v227 = vunpack.c.l.b16 %v179
    %v228 = vunpack.c.l.b16 %v180
    %v229 = vunpack.c.l.b16 %v181
    %v230 = vunpack.c.l.b16 %v182
    %v231 = vunpack.c.l.b16 %v183
    %v232 = vunpack.c.l.b16 %v184
    %v233 = vunpack.c.l.b16 %v185
    %v234 = vunpack.c.l.b16 %v186
    %v235 = vunpack.c.l.b16 %v187
    %v236 = vunpack.c.l.b16 %v188
    %v237 = vunpack.c.l.b16 %v189
    %v238 = vunpack.c.l.b16 %v190
    %v239 = vunpack.c.l.b16 %v191
    %v240 = vpack.c.b16 %v225, %v224
    %v241 = vpack.c.b16 %v227, %v226
    %v242 = vpack.c.b16 %v229, %v228
    %v243 = vpack.c.b16 %v231, %v230
    %v244 = vpack.c.b16 %v233, %v232
    %v245 = vpack.c.b16 %v235, %v234
    %v246 = vpack.c.b16 %v237, %v236
    %v247 = vpack.c.b16 %v239, %v238
    %256 = vmatprep.subr.bf16.mxu0 0
    %257 = vmatpush1.bf16.xpose.msra.mxu0 %v240
    %258 = vmatprep.subr.bf16.mxu0 0
    %259 = vmatpush1.bf16.xpose.msra.mxu0 %v241
    %260 = vmatprep.subr.bf16.mxu0 0
    %261 = vmatpush1.bf16.xpose.msra.mxu0 %v242
    %262 = vmatprep.subr.bf16.mxu0 0
    %263 = vmatpush1.bf16.xpose.msra.mxu0 %v243
    %264 = vmatprep.subr.bf16.mxu0 0
    %265 = vmatpush1.bf16.xpose.msra.mxu0 %v244
    %266 = vmatprep.subr.bf16.mxu0 0
    %267 = vmatpush1.bf16.xpose.msra.mxu0 %v245
    %268 = vmatprep.subr.bf16.mxu0 0
    %269 = vmatpush1.bf16.xpose.msra.mxu0 %v246
    %270 = vmatprep.subr.bf16.mxu0 0
    %271 = vmatpush1.bf16.xpose.msra.mxu0 %v247
    %272 = vmatprep.subr.bf16.mxu0 0
    %273 = vmatpush1.bf16.xpose.msra.mxu0 0
    %274 = vmatprep.subr.bf16.mxu0 0
    %275 = vmatpush1.bf16.xpose.msra.mxu0 0
    %276 = vmatprep.subr.bf16.mxu0 0
    %277 = vmatpush1.bf16.xpose.msra.mxu0 0
    %278 = vmatprep.subr.bf16.mxu0 0
    %279 = vmatpush1.bf16.xpose.msra.mxu0 0
    %280 = vmatprep.subr.bf16.mxu0 0
    %281 = vmatpush1.bf16.xpose.msra.mxu0 0
    %282 = vmatprep.subr.bf16.mxu0 0
    %283 = vmatpush1.bf16.xpose.msra.mxu0 0
    %284 = vmatprep.subr.bf16.mxu0 0
    %285 = vmatpush1.bf16.xpose.msra.mxu0 0
    %286 = vmatprep.subr.bf16.mxu0 0
    %287 = vmatpush1.bf16.xpose.msra.mxu0 0
    %288 = vmatprep.mubr.bf16.mxu0 0
    %289 = vmatmul.mubr.bf16.gmra.mrb[0].mxu0 %v174
    %v290 = vpop.f32.mrb[0].mxu0
    %v291 = vadd.f32 0.0, %v290
    %v292 = vpop.f32.mrb[0].mxu0
    %v293 = vpop.f32.mrb[0].mxu0
    %v294 = vadd.f32 0.0, %v293
    %v295 = vpop.f32.mrb[0].mxu0
    %296 = vdwg.mxu0
    %v313 = vunpack.c.l.b16 %v192
    %v314 = vunpack.c.l.b16 %v193
    %v315 = vunpack.c.l.b16 %v194
    %v316 = vunpack.c.l.b16 %v195
    %v317 = vunpack.c.l.b16 %v196
    %v318 = vunpack.c.l.b16 %v197
    %v319 = vunpack.c.l.b16 %v198
    %v320 = vunpack.c.l.b16 %v199
    %v321 = vunpack.c.l.b16 %v200
    %v322 = vunpack.c.l.b16 %v201
    %v323 = vunpack.c.l.b16 %v202
    %v324 = vunpack.c.l.b16 %v203
    %v325 = vunpack.c.l.b16 %v204
    %v326 = vunpack.c.l.b16 %v205
    %v327 = vunpack.c.l.b16 %v206
    %v328 = vunpack.c.l.b16 %v207
    %v329 = vpack.c.b16 %v314, %v313
    %v330 = vpack.c.b16 %v316, %v315
    %v331 = vpack.c.b16 %v318, %v317
    %v332 = vpack.c.b16 %v320, %v319
    %v333 = vpack.c.b16 %v322, %v321
    %v334 = vpack.c.b16 %v324, %v323
    %v335 = vpack.c.b16 %v326, %v325
    %v336 = vpack.c.b16 %v328, %v327
    %345 = vmatprep.subr.bf16.mxu0 0
    %346 = vmatpush1.bf16.xpose.msra.mxu0 %v329
    %347 = vmatprep.subr.bf16.mxu0 0
    %348 = vmatpush1.bf16.xpose.msra.mxu0 %v330
    %349 = vmatprep.subr.bf16.mxu0 0
    %350 = vmatpush1.bf16.xpose.msra.mxu0 %v331
    %351 = vmatprep.subr.bf16.mxu0 0
    %352 = vmatpush1.bf16.xpose.msra.mxu0 %v332
    %353 = vmatprep.subr.bf16.mxu0 0
    %354 = vmatpush1.bf16.xpose.msra.mxu0 %v333
    %355 = vmatprep.subr.bf16.mxu0 0
    %356 = vmatpush1.bf16.xpose.msra.mxu0 %v334
    %357 = vmatprep.subr.bf16.mxu0 0
    %358 = vmatpush1.bf16.xpose.msra.mxu0 %v335
    %359 = vmatprep.subr.bf16.mxu0 0
    %360 = vmatpush1.bf16.xpose.msra.mxu0 %v336
    %361 = vmatprep.subr.bf16.mxu0 0
    %362 = vmatpush1.bf16.xpose.msra.mxu0 0
    %363 = vmatprep.subr.bf16.mxu0 0
    %364 = vmatpush1.bf16.xpose.msra.mxu0 0
    %365 = vmatprep.subr.bf16.mxu0 0
    %366 = vmatpush1.bf16.xpose.msra.mxu0 0
    %367 = vmatprep.subr.bf16.mxu0 0
    %368 = vmatpush1.bf16.xpose.msra.mxu0 0
    %369 = vmatprep.subr.bf16.mxu0 0
    %370 = vmatpush1.bf16.xpose.msra.mxu0 0
    %371 = vmatprep.subr.bf16.mxu0 0
    %372 = vmatpush1.bf16.xpose.msra.mxu0 0
    %373 = vmatprep.subr.bf16.mxu0 0
    %374 = vmatpush1.bf16.xpose.msra.mxu0 0
    %375 = vmatprep.subr.bf16.mxu0 0
    %376 = vmatpush1.bf16.xpose.msra.mxu0 0
    %377 = vmatprep.mubr.bf16.mxu0 0
    %378 = vmatmul.mubr.bf16.gmra.mrb[0].mxu0 %v175
    %v379 = vpop.f32.mrb[0].mxu0
    %v380 = vadd.f32 0.0, %v379
    %v381 = vpop.f32.mrb[0].mxu0
    %v382 = vpop.f32.mrb[0].mxu0
    %v383 = vadd.f32 0.0, %v382
    %v384 = vpop.f32.mrb[0].mxu0
    %385 = vdwg.mxu0
    %386 = vst [vmem:[#allocation9] sm:$0xff] %v291
    %387 = vst [vmem:[#allocation9 + $0x8] sm:$0xff] %v294
    %388 = vst [vmem:[#allocation9 + $0x10] sm:$0xff] %v380
    %389 = vst [vmem:[#allocation9 + $0x18] sm:$0xff] %v383
    // Predicated region
    $region30: #{tpu_custom_call.1} parent=1 // pred_check
      _
    $region31: #{tpu_custom_call.1} parent=1 // pred_check_branch
      %391 = sbr.rel (0) target = $region33
    $region32: #{tpu_custom_call.1} parent=1 // pred_region
      %s393 = ssub.s32 512, 512
      %394 = vsyncadd [#allocation5], %s393
      %s395 = sshll.u32 [#allocation9], 4
      %s396 = int_to_ptr.vmem [resolvable:$true] %s395
      %401 = dma.vmem_to_hbm [thread:$0]  %s396, 512, %s3, [#allocation5], 128, 128, 8
    $region33: #{tpu_custom_call.1} parent=1 // pred_fallthru
      _
    // Predicated region
    $region34: #{tpu_custom_call.1} parent=1 // pred_check
      _
    $region35: #{tpu_custom_call.1} parent=1 // pred_check_branch
      %403 = sbr.rel (0) target = $region37
    $region36: #{tpu_custom_call.1} parent=1 // pred_region
      %404 = dma.done [#allocation5], 512
    $region37: #{tpu_custom_call.1} parent=1 // pred_fallthru
      _
    %405 = vsyncpa [#allocation4], 1
    %406 = vsyncpa [#allocation7], 1
    %407 = vsyncpa [#allocation5], 1

</llo_original>
